<compile_context>
chip_gen: v7x
topology: tpu7x:2x2x1
jax: 0.10.0
libtpu: 0.0.40
codegen_flags: <defaults>
</compile_context>

<pallas_src>
import functools
import math

import jax
import jax.numpy as jnp
from jax import lax
from jax.experimental import pallas as pl
from jax.experimental.pallas import tpu as pltpu

_LANE = 128
_SUBLANE = 8


def _round_up(x, m):
    return ((x + m - 1) // m) * m


def _gelu_exact(x):
    # Matches torch.nn.GELU() default (erf-based, not tanh approximation).
    return 0.5 * x * (1.0 + lax.erf(x * (1.0 / math.sqrt(2.0))))


def _vmem_capacity_bytes():
    try:
        info = pltpu.get_tpu_info()
        cap = getattr(info, "vmem_capacity_bytes", None)
        if cap:
            return int(cap)
    except Exception:
        pass
    return 64 * 1024 * 1024  # conservative default (v7x per-TC VMEM)


def _divisor_tile(total, target, quantum=_LANE):
    """Largest multiple of `quantum` dividing `total` that is <= max(target, quantum)."""
    m = total // quantum
    t = max(1, target // quantum)
    best = 1
    for d in range(1, m + 1):
        if m % d == 0 and d <= t:
            best = d
    return best * quantum


# ---------------------------------------------------------------------------
# Kernel
# ---------------------------------------------------------------------------
def _mlp_kernel(x_ref, w1_ref, b1_ref, w2_ref, b2_ref, o_ref, acc_ref, *, n_k):
    # x_ref:   (tm, Cin_p)   resident across the j (output-col) and k (hidden) axes
    # w1_ref:  (Cin_p, tk)   hidden chunk k of fc1 weight
    # b1_ref:  (1, tk)       hidden chunk k of fc1 bias
    # w2_ref:  (tk, tn)      (hidden chunk k, output chunk j) of fc2 weight
    # b2_ref:  (1, tn)       output chunk j of fc2 bias
    # o_ref:   (tm, tn)
    # acc_ref: f32 accumulator scratch (only used when n_k > 1)
    h = jnp.dot(x_ref[...], w1_ref[...], preferred_element_type=jnp.float32)
    h = _gelu_exact(h + b1_ref[...])
    # TODO(synk): nn.Dropout(p=0.0) is identity; stochastic dropout would use
    # pltpu.prng_seed / pltpu.prng_random_bits if a nonzero rate were needed.
    part = jnp.dot(h.astype(w2_ref.dtype), w2_ref[...],
                   preferred_element_type=jnp.float32)

    if n_k == 1:
        # Fast path: no reduction over the hidden axis, skip the accumulator.
        o_ref[...] = (part + b2_ref[...]).astype(o_ref.dtype)
    else:
        k = pl.program_id(2)

        @pl.when(k == 0)
        def _():
            acc_ref[...] = part          # direct write: no zero-fill + reload

        @pl.when(k > 0)
        def _():
            acc_ref[...] += part

        @pl.when(k == n_k - 1)
        def _():
            o_ref[...] = (acc_ref[...] + b2_ref[...]).astype(o_ref.dtype)


# ---------------------------------------------------------------------------
# Parameter preparation (padding hoisted out of the per-call path)
# ---------------------------------------------------------------------------
def prepare_mlp_params(w1, b1, w2, b2, *, compute_dtype=None):
    """Pad params once to 128-aligned channel dims and optionally cast.

    w1: (Cin, H), b1: (H,), w2: (H, Cout), b2: (Cout,) -- transposed vs.
    torch.nn.Linear.weight so the kernel computes x @ W + b directly.

    Zero padding is exact for this fusion: padded x columns hit zero w1 rows,
    padded hidden units are GELU(0) == 0 *and* hit zero w2 rows, and padded
    output columns are sliced off by the wrapper.
    """
    Cin, H = w1.shape
    Cout = w2.shape[1]
    if compute_dtype is not None:
        w1, b1, w2, b2 = (a.astype(compute_dtype) for a in (w1, b1, w2, b2))
    Cin_p = _round_up(Cin, _LANE)
    H_p = _round_up(H, _LANE)
    Cout_p = _round_up(Cout, _LANE)
    w1_p = jnp.pad(w1, ((0, Cin_p - Cin), (0, H_p - H)))
    b1_p = jnp.pad(b1.reshape(1, H), ((0, 0), (0, H_p - H)))
    w2_p = jnp.pad(w2, ((0, H_p - H), (0, Cout_p - Cout)))
    b2_p = jnp.pad(b2.reshape(1, Cout), ((0, 0), (0, Cout_p - Cout)))
    return {"w1": w1_p, "b1": b1_p, "w2": w2_p, "b2": b2_p,
            "dims": (Cin, H, Cout)}


# ---------------------------------------------------------------------------
# Tile selection (VMEM-budget driven, generation-aware via get_tpu_info)
# ---------------------------------------------------------------------------
def _pick_tiles(M, Cin_p, H_p, Cout_p, itemsize, tm=None, tk=None, tn=None):
    vmem_cap = _vmem_capacity_bytes()
    vmem_ceiling = int(vmem_cap * 0.78)   # what we let Mosaic use
    budget = int(vmem_ceiling / 1.35)     # target tile footprint (headroom)

    # Output-column tile: single block unless Cout is very wide.
    if tn is None:
        tn = Cout_p if Cout_p <= 4096 else _divisor_tile(Cout_p, 2048)
    else:
        tn = _divisor_tile(Cout_p, tn)

    # Hidden (reduction) tile: keep the weights fully VMEM-resident when they
    # fit; otherwise stream 128-aligned chunks that exactly divide H_p.
    if tk is None:
        resident = 2 * (Cin_p * H_p + H_p * tn + H_p + tn) * itemsize
        tk = H_p if resident <= int(0.45 * budget) else _divisor_tile(H_p, 512)
    else:
        tk = _divisor_tile(H_p, tk)
    n_k = H_p // tk

    def footprint(tm_):
        fp = itemsize * (2 * tm_ * Cin_p + 2 * Cin_p * tk + 2 * tk
                         + 2 * tk * tn + 2 * tn + 2 * tm_ * tn)
        fp += 4 * (tm_ * tn if n_k > 1 else _SUBLANE * _LANE)
        return fp

    M8 = _round_up(max(M, 1), _SUBLANE)
    if tm is not None:
        tm = max(_SUBLANE, _round_up(min(tm, M8), _SUBLANE))
    else:
        tm_cap = _SUBLANE
        for cand in (1024, 896, 768, 640, 512, 384, 256, 128, 64, 32, 16, 8):
            if footprint(cand) <= budget:
                tm_cap = cand
                break
        if M8 <= _LANE:
            tm = max(_SUBLANE, min(M8, _round_up(tm_cap, _SUBLANE)))
        else:
            # Divisor of round_up(M, 128): minimal row padding, lane-dense.
            tm = _divisor_tile(_round_up(M, _LANE), max(tm_cap, _LANE))
        # Megacore (v7x): ensure the parallel axes have >= 2 steps when the
        # weights are resident (so splitting rows costs no extra weight DMA).
        if (n_k == 1 and Cout_p // tn == 1 and tm >= 256
                and _round_up(M, tm) // tm == 1):
            tm = _round_up(tm // 2, _SUBLANE)

    vmem_limit = int(min(vmem_cap - (8 << 20),
                         max(32 << 20, footprint(tm) * 1.3)))
    return tm, tk, tn, vmem_limit


# ---------------------------------------------------------------------------
# Forward
# ---------------------------------------------------------------------------
@functools.partial(jax.jit, static_argnames=("cout", "tm", "tk", "tn", "vmem_limit"))
def _mlp_forward_impl(x2d, w1_p, b1_p, w2_p, b2_p, *, cout, tm, tk, tn, vmem_limit):
    M, Cin = x2d.shape
    Cin_p, H_p = w1_p.shape
    Cout_p = w2_p.shape[1]
    out_dtype = x2d.dtype

    # Make sure bf16 operands actually reach the MXU if params were prepared
    # in bf16 (accumulation stays f32 inside the kernel).
    if x2d.dtype != w1_p.dtype:
        x2d = x2d.astype(w1_p.dtype)

    M_p = _round_up(M, tm)
    if (M_p - M) or (Cin_p - Cin):
        x2d = jnp.pad(x2d, ((0, M_p - M), (0, Cin_p - Cin)))

    n_rows, n_cols, n_k = M_p // tm, Cout_p // tn, H_p // tk
    grid = (n_rows, n_cols, n_k)
    acc_shape = (tm, tn) if n_k > 1 else (_SUBLANE, _LANE)

    itemsize = jnp.dtype(w1_p.dtype).itemsize
    cost = pl.CostEstimate(
        flops=int(2 * M * H_p * (Cin_p + Cout_p)),
        transcendentals=int(M * H_p),
        bytes_accessed=int(itemsize * (x2d.size + w1_p.size + w2_p.size
                                       + b1_p.size + b2_p.size)
                           + jnp.dtype(out_dtype).itemsize * M_p * Cout_p),
    )

    out = pl.pallas_call(
        functools.partial(_mlp_kernel, n_k=n_k),
        out_shape=jax.ShapeDtypeStruct((M_p, Cout_p), out_dtype),
        grid_spec=pltpu.PrefetchScalarGridSpec(
            num_scalar_prefetch=0,
            grid=grid,
            in_specs=[
                pl.BlockSpec((tm, Cin_p), lambda i, j, k: (i, 0)),
                pl.BlockSpec((Cin_p, tk), lambda i, j, k: (0, k)),
                pl.BlockSpec((1, tk), lambda i, j, k: (0, k)),
                pl.BlockSpec((tk, tn), lambda i, j, k: (k, j)),
                pl.BlockSpec((1, tn), lambda i, j, k: (0, j)),
            ],
            out_specs=pl.BlockSpec((tm, tn), lambda i, j, k: (i, j)),
            scratch_shapes=[pltpu.VMEM(acc_shape, jnp.float32)],
        ),
        compiler_params=pltpu.CompilerParams(
            dimension_semantics=("parallel", "parallel", "arbitrary"),
            vmem_limit_bytes=int(vmem_limit),
        ),
        cost_estimate=cost,
    )(x2d, w1_p, b1_p, w2_p, b2_p)

    return out[:M, :cout]


def mlp_forward(x, params, *, tm=None, tk=None, tn=None):
    """x: (..., in_features) -> (..., out_features). `params` from prepare_mlp_params."""
    Cin, H, Cout = params["dims"]
    assert x.shape[-1] == Cin, "last dim of x must equal in_features"
    lead = x.shape[:-1]
    M = int(math.prod(lead)) if lead else 1

    w1_p, b1_p, w2_p, b2_p = params["w1"], params["b1"], params["w2"], params["b2"]
    Cin_p, H_p = w1_p.shape
    Cout_p = w2_p.shape[1]
    itemsize = jnp.dtype(w1_p.dtype).itemsize

    tm_e, tk_e, tn_e, vmem_limit = _pick_tiles(
        M, Cin_p, H_p, Cout_p, itemsize, tm=tm, tk=tk, tn=tn)

    out2d = _mlp_forward_impl(
        x.reshape(M, Cin), w1_p, b1_p, w2_p, b2_p,
        cout=Cout, tm=tm_e, tk=tk_e, tn=tn_e, vmem_limit=vmem_limit)
    return out2d.reshape(*lead, Cout)


# ---------------------------------------------------------------------------
# Reference / init helpers
# ---------------------------------------------------------------------------
def init_mlp_params(key, in_features, hidden_features, out_features, dtype=jnp.float32):
    """Deterministic synthetic parameters (same init style as nn.Linear, transposed)."""
    k1, k2, k3, k4 = jax.random.split(key, 4)
    s1 = 1.0 / math.sqrt(in_features)
    s2 = 1.0 / math.sqrt(hidden_features)
    w1 = jax.random.uniform(k1, (in_features, hidden_features), dtype, -s1, s1)
    b1 = jax.random.uniform(k2, (hidden_features,), dtype, -s1, s1)
    w2 = jax.random.uniform(k3, (hidden_features, out_features), dtype, -s2, s2)
    b2 = jax.random.uniform(k4, (out_features,), dtype, -s2, s2)
    return w1, b1, w2, b2


def mlp_reference(x, w1, b1, w2, b2):
    h = x @ w1 + b1
    h = _gelu_exact(h)
    return h @ w2 + b2


if __name__ == "__main__":
    key = jax.random.PRNGKey(0)

    # --- test 1: module-default small shapes, single-tile fast path ---------
    B, N = 2, 8
    in_f, hid_f, out_f = 32, 64, 32
    kx, kp = jax.random.split(key)
    x = jax.random.normal(kx, (B, N, in_f), dtype=jnp.float32)
    w1, b1, w2, b2 = init_mlp_params(kp, in_f, hid_f, out_f)
    params = prepare_mlp_params(w1, b1, w2, b2)

    out = jax.block_until_ready(mlp_forward(x, params))
    ref = mlp_reference(x, w1, b1, w2, b2)
    assert out.shape == (B, N, out_f)
    assert jnp.allclose(out, ref, atol=1e-5, rtol=1e-5), "mismatch vs reference (test 1)"

    # --- test 2: forced multi-tile path (row + column + reduction grids) ----
    in_f2, hid_f2, out_f2 = 64, 256, 256
    kx2, kp2 = jax.random.split(kp)
    x2 = jax.random.normal(kx2, (B, N, in_f2), dtype=jnp.float32)
    p2 = init_mlp_params(kp2, in_f2, hid_f2, out_f2)
    params2 = prepare_mlp_params(*p2)

    out2 = jax.block_until_ready(mlp_forward(x2, params2, tm=8, tk=128, tn=128))
    ref2 = mlp_reference(x2, *p2)
    assert out2.shape == (B, N, out_f2)
    assert jnp.allclose(out2, ref2, atol=1e-4, rtol=1e-4), "mismatch vs reference (test 2)"

    print("KERNEL_OK")
</pallas_src>

<mosaic_0001>
module attributes {stable_mosaic.version = 11 : i64} {
  func.func @_mlp_kernel(%arg0: i32, %arg1: i32, %arg2: i32, %arg3: memref<16x128xf32, #tpu.memory_space<vmem>>, %arg4: memref<128x128xf32, #tpu.memory_space<vmem>>, %arg5: memref<1x128xf32, #tpu.memory_space<vmem>>, %arg6: memref<128x128xf32, #tpu.memory_space<vmem>>, %arg7: memref<1x128xf32, #tpu.memory_space<vmem>>, %arg8: memref<16x128xf32, #tpu.memory_space<vmem>>, %arg9: memref<8x128xf32, #tpu.memory_space<vmem>>) attributes {dimension_semantics = [#tpu.dimension_semantics<parallel>, #tpu.dimension_semantics<parallel>, #tpu.dimension_semantics<arbitrary>], iteration_bounds = array<i64: 1, 1, 1>, scalar_prefetch = 0 : i64, scratch_operands = 1 : i64, tpu.core_type = #tpu.core_type<tc>, window_params = [{transform_indices = @transform_0, window_bounds = array<i64: 16, 128>}, {transform_indices = @transform_1, window_bounds = array<i64: 128, 128>}, {transform_indices = @transform_2, window_bounds = array<i64: 1, 128>}, {transform_indices = @transform_3, window_bounds = array<i64: 128, 128>}, {transform_indices = @transform_4, window_bounds = array<i64: 1, 128>}, {transform_indices = @transform_5, window_bounds = array<i64: 16, 128>}]} {
    %c0 = arith.constant 0 : index
    %c0_0 = arith.constant 0 : index
    %0 = vector.load %arg3[%c0, %c0_0] : memref<16x128xf32, #tpu.memory_space<vmem>>, vector<16x128xf32>
    %c0_1 = arith.constant 0 : index
    %c0_2 = arith.constant 0 : index
    %1 = vector.load %arg4[%c0_1, %c0_2] : memref<128x128xf32, #tpu.memory_space<vmem>>, vector<128x128xf32>
    %cst = arith.constant dense<0.000000e+00> : vector<16x128xf32>
    %2 = tpu.matmul %0, %1, %cst {dimension_numbers = #tpu.dot_dimension_numbers<[1], [0], [0], [1], [0, 0, 1, 1], [], []>} : vector<16x128xf32>, vector<128x128xf32>, vector<16x128xf32> -> vector<16x128xf32>
    %c0_3 = arith.constant 0 : index
    %c0_4 = arith.constant 0 : index
    %3 = vector.load %arg5[%c0_3, %c0_4] : memref<1x128xf32, #tpu.memory_space<vmem>>, vector<1x128xf32>
    %4 = vector.broadcast %3 : vector<1x128xf32> to vector<16x128xf32>
    %5 = arith.addf %2, %4 : vector<16x128xf32>
    %cst_5 = arith.constant 5.000000e-01 : f32
    %6 = vector.broadcast %cst_5 : f32 to vector<16x128xf32>
    %7 = arith.mulf %6, %5 : vector<16x128xf32>
    %cst_6 = arith.constant 0.707106769 : f32
    %8 = vector.broadcast %cst_6 : f32 to vector<16x128xf32>
    %9 = arith.mulf %5, %8 : vector<16x128xf32>
    %10 = math.erf %9 : vector<16x128xf32>
    %cst_7 = arith.constant 1.000000e+00 : f32
    %11 = vector.broadcast %cst_7 : f32 to vector<16x128xf32>
    %12 = arith.addf %11, %10 : vector<16x128xf32>
    %13 = arith.mulf %7, %12 : vector<16x128xf32>
    %c0_8 = arith.constant 0 : index
    %c0_9 = arith.constant 0 : index
    %14 = vector.load %arg6[%c0_8, %c0_9] : memref<128x128xf32, #tpu.memory_space<vmem>>, vector<128x128xf32>
    %cst_10 = arith.constant dense<0.000000e+00> : vector<16x128xf32>
    %15 = tpu.matmul %13, %14, %cst_10 {dimension_numbers = #tpu.dot_dimension_numbers<[1], [0], [0], [1], [0, 0, 1, 1], [], []>} : vector<16x128xf32>, vector<128x128xf32>, vector<16x128xf32> -> vector<16x128xf32>
    %c0_11 = arith.constant 0 : index
    %c0_12 = arith.constant 0 : index
    %16 = vector.load %arg7[%c0_11, %c0_12] : memref<1x128xf32, #tpu.memory_space<vmem>>, vector<1x128xf32>
    %17 = vector.broadcast %16 : vector<1x128xf32> to vector<16x128xf32>
    %18 = arith.addf %15, %17 : vector<16x128xf32>
    %c0_13 = arith.constant 0 : index
    %c0_14 = arith.constant 0 : index
    %19 = vector.load %arg8[%c0_13, %c0_14] : memref<16x128xf32, #tpu.memory_space<vmem>>, vector<16x128xf32>
    tpu.vector_store %arg8[%c0_13, %c0_14], %18 {strides = array<i32>} : memref<16x128xf32, #tpu.memory_space<vmem>>, vector<16x128xf32>,
    return
  }
  func.func @transform_0(%arg0: i32, %arg1: i32, %arg2: i32) -> (i32, i32) {
    %c0_i32 = arith.constant 0 : i32
    %c0_i32_0 = arith.constant 0 : i32
    return %arg0, %c0_i32 : i32, i32
  }
  func.func @transform_1(%arg0: i32, %arg1: i32, %arg2: i32) -> (i32, i32) {
    %c0_i32 = arith.constant 0 : i32
    %c0_i32_0 = arith.constant 0 : i32
    return %c0_i32, %arg2 : i32, i32
  }
  func.func @transform_2(%arg0: i32, %arg1: i32, %arg2: i32) -> (i32, i32) {
    %c0_i32 = arith.constant 0 : i32
    %c0_i32_0 = arith.constant 0 : i32
    return %c0_i32, %arg2 : i32, i32
  }
  func.func @transform_3(%arg0: i32, %arg1: i32, %arg2: i32) -> (i32, i32) {
    %c0_i32 = arith.constant 0 : i32
    return %arg2, %arg1 : i32, i32
  }
  func.func @transform_4(%arg0: i32, %arg1: i32, %arg2: i32) -> (i32, i32) {
    %c0_i32 = arith.constant 0 : i32
    %c0_i32_0 = arith.constant 0 : i32
    return %c0_i32, %arg1 : i32, i32
  }
  func.func @transform_5(%arg0: i32, %arg1: i32, %arg2: i32) -> (i32, i32) {
    %c0_i32 = arith.constant 0 : i32
    return %arg0, %arg1 : i32, i32
  }
}

</mosaic_0001>

<llo_original>
// kernel: _mlp_forward_impl.1
$region0: #{_mlp_forward_impl.1}
  #allocation0 [shape = 'u32[]', space=smem, size = 0x4, offset = 0x4, fixed_abs, tag = 'smem constant byte address 0x4 - core index']
  #allocation1 [shape = 'u32[144,128]{1,0:T(1,128)}', space=vmem, size = 0x12000, scoped, tag = 'internal scratch']
  #allocation2 [shape = 'f32[8,128]{1,0:T(8,128)}', space=vmem, size = 0x1000, scoped, tag = 'scratch operand']
  %s0 = inlined_call_operand.vmem [shape: f32[16,128], index: 0, kind: input, shape index: {}]
  %s1 = inlined_call_operand.hbm [shape: f32[128,128], index: 1, kind: input, shape index: {}]
  %s2 = inlined_call_operand.vmem [shape: f32[1,128], index: 2, kind: input, shape index: {}]
  %s3 = inlined_call_operand.hbm [shape: f32[128,128], index: 3, kind: input, shape index: {}]
  %s4 = inlined_call_operand.vmem [shape: f32[1,128], index: 4, kind: input, shape index: {}]
  %s5 = inlined_call_operand.hbm [shape: f32[16,128], index: 5, kind: output, shape index: {}]
  %s6 = sld [smem:[#allocation0]]
  $region38: #{_mlp_forward_impl.1} parent=0
    _
  %s8 = ssub.s32 1, %s6
  %s9 = scalar_select 0, %s8, %s6
  $region1: #{_mlp_forward_impl.1} parent=0
    #allocation3 [shape = 'u8[65536]{0}', space=vmem, size = 0x10000, scoped, tag = 'input window, operand 1, single buffered']
    #allocation4 [shape = 's32[1]{0}', space=sflag, size = 0x4, scoped, tag = 'scoped memory for _mlp_forward_impl.1']
    #allocation5 [shape = 's32[1]{0}', space=sflag, size = 0x4, scoped, tag = 'scoped memory for _mlp_forward_impl.1']
    #allocation6 [shape = 'u8[65536]{0}', space=vmem, size = 0x10000, scoped, tag = 'input window, operand 3, single buffered']
    #allocation7 [shape = 's32[1]{0}', space=sflag, size = 0x4, scoped, tag = 'scoped memory for _mlp_forward_impl.1']
    #allocation8 [shape = 'u8[8192]{0}', space=vmem, size = 0x2000, scoped, tag = 'output window, operand 0, single buffered']
    %10 = vsyncpa [#allocation4], 0
    %11 = vsyncpa [#allocation7], 0
    %12 = vsyncpa [#allocation5], 0
    // Predicated region
    $region2: #{_mlp_forward_impl.1} parent=1 // pred_check
      _
    $region3: #{_mlp_forward_impl.1} parent=1 // pred_check_branch
      %14 = sbr.rel (0) target = $region5
    $region4: #{_mlp_forward_impl.1} parent=1 // pred_region
      _
    $region5: #{_mlp_forward_impl.1} parent=1 // pred_fallthru
      _
    // Predicated region
    $region6: #{_mlp_forward_impl.1} parent=1 // pred_check
      _
    $region7: #{_mlp_forward_impl.1} parent=1 // pred_check_branch
      %16 = sbr.rel (0) target = $region9
    $region8: #{_mlp_forward_impl.1} parent=1 // pred_region
      %s18 = ssub.s32 2048, 2048
      %19 = vsyncadd [#allocation4], %s18
      %s20 = sshll.u32 [#allocation3], 4
      %s21 = int_to_ptr.vmem [resolvable:$true] %s20
      %26 = dma.hbm_to_vmem [thread:$0]  %s1, 2048, %s21, [#allocation4], 128, 128, 8
    $region9: #{_mlp_forward_impl.1} parent=1 // pred_fallthru
      _
    // Predicated region
    $region10: #{_mlp_forward_impl.1} parent=1 // pred_check
      _
    $region11: #{_mlp_forward_impl.1} parent=1 // pred_check_branch
      %28 = sbr.rel (0) target = $region13
    $region12: #{_mlp_forward_impl.1} parent=1 // pred_region
      _
    $region13: #{_mlp_forward_impl.1} parent=1 // pred_fallthru
      _
    // Predicated region
    $region14: #{_mlp_forward_impl.1} parent=1 // pred_check
      _
    $region15: #{_mlp_forward_impl.1} parent=1 // pred_check_branch
      %30 = sbr.rel (0) target = $region17
    $region16: #{_mlp_forward_impl.1} parent=1 // pred_region
      %s32 = ssub.s32 2048, 2048
      %33 = vsyncadd [#allocation7], %s32
      %s34 = sshll.u32 [#allocation6], 4
      %s35 = int_to_ptr.vmem [resolvable:$true] %s34
      %40 = dma.hbm_to_vmem [thread:$0]  %s3, 2048, %s35, [#allocation7], 128, 128, 8
    $region17: #{_mlp_forward_impl.1} parent=1 // pred_fallthru
      _
    // Predicated region
    $region18: #{_mlp_forward_impl.1} parent=1 // pred_check
      _
    $region19: #{_mlp_forward_impl.1} parent=1 // pred_check_branch
      %42 = sbr.rel (0) target = $region21
    $region20: #{_mlp_forward_impl.1} parent=1 // pred_region
      _
    $region21: #{_mlp_forward_impl.1} parent=1 // pred_fallthru
      _
    // Predicated region
    $region22: #{_mlp_forward_impl.1} parent=1 // pred_check
      _
    $region23: #{_mlp_forward_impl.1} parent=1 // pred_check_branch
      %44 = sbr.rel (0) target = $region25
    $region24: #{_mlp_forward_impl.1} parent=1 // pred_region
      %45 = dma.done [#allocation4], 2048
    $region25: #{_mlp_forward_impl.1} parent=1 // pred_fallthru
      _
    // Predicated region
    $region26: #{_mlp_forward_impl.1} parent=1 // pred_check
      _
    $region27: #{_mlp_forward_impl.1} parent=1 // pred_check_branch
      %47 = sbr.rel (0) target = $region29
    $region28: #{_mlp_forward_impl.1} parent=1 // pred_region
      %48 = dma.done [#allocation7], 2048
    $region29: #{_mlp_forward_impl.1} parent=1 // pred_fallthru
      _
    %v49 = vld [vmem:[%s0] sm:$0xff]
    %v50 = vld [vmem:[%s0 + $0x8] sm:$0xff]
    %v51 = vld [vmem:[#allocation3] sm:$0xff]
    %v52 = vld [vmem:[#allocation3 + $0x8] sm:$0xff]
    %v53 = vld [vmem:[#allocation3 + $0x10] sm:$0xff]
    %v54 = vld [vmem:[#allocation3 + $0x18] sm:$0xff]
    %v55 = vld [vmem:[#allocation3 + $0x20] sm:$0xff]
    %v56 = vld [vmem:[#allocation3 + $0x28] sm:$0xff]
    %v57 = vld [vmem:[#allocation3 + $0x30] sm:$0xff]
    %v58 = vld [vmem:[#allocation3 + $0x38] sm:$0xff]
    %v59 = vld [vmem:[#allocation3 + $0x40] sm:$0xff]
    %v60 = vld [vmem:[#allocation3 + $0x48] sm:$0xff]
    %v61 = vld [vmem:[#allocation3 + $0x50] sm:$0xff]
    %v62 = vld [vmem:[#allocation3 + $0x58] sm:$0xff]
    %v63 = vld [vmem:[#allocation3 + $0x60] sm:$0xff]
    %v64 = vld [vmem:[#allocation3 + $0x68] sm:$0xff]
    %v65 = vld [vmem:[#allocation3 + $0x70] sm:$0xff]
    %v66 = vld [vmem:[#allocation3 + $0x78] sm:$0xff]
    %v67 = vld [vmem:[%s2] sm:$0x1]
    %v69 = vlaneseq
    %v70 = vshrl.u32 %v69, 7
    %v71 = vsub.s32 0, %v70
    %v72 = vrot.slane %v67, %v71
    %74 = vmatprep.subr.mxu0 0.0
    %75 = vmatpush1.msra.mxu0 %v51
    %76 = vmatprep.subr.mxu0 0.0
    %77 = vmatpush1.msra.mxu0 %v52
    %78 = vmatprep.subr.mxu0 0.0
    %79 = vmatpush1.msra.mxu0 %v53
    %80 = vmatprep.subr.mxu0 0.0
    %81 = vmatpush1.msra.mxu0 %v54
    %82 = vmatprep.subr.mxu0 0.0
    %83 = vmatpush1.msra.mxu0 %v55
    %84 = vmatprep.subr.mxu0 0.0
    %85 = vmatpush1.msra.mxu0 %v56
    %86 = vmatprep.subr.mxu0 0.0
    %87 = vmatpush1.msra.mxu0 %v57
    %88 = vmatprep.subr.mxu0 0.0
    %89 = vmatpush1.msra.mxu0 %v58
    %90 = vmatprep.subr.mxu0 0.0
    %91 = vmatpush1.msra.mxu0 %v59
    %92 = vmatprep.subr.mxu0 0.0
    %93 = vmatpush1.msra.mxu0 %v60
    %94 = vmatprep.subr.mxu0 0.0
    %95 = vmatpush1.msra.mxu0 %v61
    %96 = vmatprep.subr.mxu0 0.0
    %97 = vmatpush1.msra.mxu0 %v62
    %98 = vmatprep.subr.mxu0 0.0
    %99 = vmatpush1.msra.mxu0 %v63
    %100 = vmatprep.subr.mxu0 0.0
    %101 = vmatpush1.msra.mxu0 %v64
    %102 = vmatprep.subr.mxu0 0.0
    %103 = vmatpush1.msra.mxu0 %v65
    %104 = vmatprep.subr.mxu0 0.0
    %105 = vmatpush1.msra.mxu0 %v66
    %106 = vmatprep.subr.mxu0 0.0
    %107 = vmatpush1.msra.mxu0 0.0
    %108 = vmatprep.subr.mxu0 0.0
    %109 = vmatpush1.msra.mxu0 0.0
    %110 = vmatprep.subr.mxu0 0.0
    %111 = vmatpush1.msra.mxu0 0.0
    %112 = vmatprep.subr.mxu0 0.0
    %113 = vmatpush1.msra.mxu0 0.0
    %114 = vmatprep.subr.mxu0 0.0
    %115 = vmatpush1.msra.mxu0 0.0
    %116 = vmatprep.subr.mxu0 0.0
    %117 = vmatpush1.msra.mxu0 0.0
    %118 = vmatprep.subr.mxu0 0.0
    %119 = vmatpush1.msra.mxu0 0.0
    %120 = vmatprep.subr.mxu0 0.0
    %121 = vmatpush1.msra.mxu0 0.0
    %122 = vmatprep.subr.mxu0 0.0
    %123 = vmatpush1.msra.mxu0 0.0
    %124 = vmatprep.subr.mxu0 0.0
    %125 = vmatpush1.msra.mxu0 0.0
    %126 = vmatprep.subr.mxu0 0.0
    %127 = vmatpush1.msra.mxu0 0.0
    %128 = vmatprep.subr.mxu0 0.0
    %129 = vmatpush1.msra.mxu0 0.0
    %130 = vmatprep.subr.mxu0 0.0
    %131 = vmatpush1.msra.mxu0 0.0
    %132 = vmatprep.subr.mxu0 0.0
    %133 = vmatpush1.msra.mxu0 0.0
    %134 = vmatprep.subr.mxu0 0.0
    %135 = vmatpush1.msra.mxu0 0.0
    %136 = vmatprep.subr.mxu0 0.0
    %137 = vmatpush1.msra.mxu0 0.0
    %138 = vmatprep.mubr.f32.mxu0 0.0
    %139 = vmatmul.mubr.f32.gmra.mrb[0].mxu0 %v49
    %v140 = vpop.f32.mrb[0].mxu0
    %v141 = vadd.f32 %v72, %v140
    %v142 = vpop.f32.mrb[0].mxu0
    %143 = vmatprep.mubr.f32.mxu0 0.0
    %144 = vmatmul.mubr.f32.gmra.mrb[0].mxu0 %v50
    %v145 = vpop.f32.mrb[0].mxu0
    %v146 = vadd.f32 %v72, %v145
    %v147 = vpop.f32.mrb[0].mxu0
    %148 = vdwg.mxu0
    %v149 = vmul.f32 %v141, 0.5
    %v150 = vmul.f32 %v146, 0.5
    %v151 = vmul.f32 %v141, 0.70710677
    %v152 = vmul.f32 %v146, 0.70710677
    %v153 = verf.f32.pop %v151
    %v154 = verf.f32.pop %v152
    %v155 = vadd.f32 %v153, 1.0
    %v156 = vadd.f32 %v154, 1.0
    %v157 = vmul.f32 %v149, %v155
    %v158 = vmul.f32 %v150, %v156
    %v159 = vld [vmem:[#allocation6] sm:$0xff]
    %v160 = vld [vmem:[#allocation6 + $0x8] sm:$0xff]
    %v161 = vld [vmem:[#allocation6 + $0x10] sm:$0xff]
    %v162 = vld [vmem:[#allocation6 + $0x18] sm:$0xff]
    %v163 = vld [vmem:[#allocation6 + $0x20] sm:$0xff]
    %v164 = vld [vmem:[#allocation6 + $0x28] sm:$0xff]
    %v165 = vld [vmem:[#allocation6 + $0x30] sm:$0xff]
    %v166 = vld [vmem:[#allocation6 + $0x38] sm:$0xff]
    %v167 = vld [vmem:[#allocation6 + $0x40] sm:$0xff]
    %v168 = vld [vmem:[#allocation6 + $0x48] sm:$0xff]
    %v169 = vld [vmem:[#allocation6 + $0x50] sm:$0xff]
    %v170 = vld [vmem:[#allocation6 + $0x58] sm:$0xff]
    %v171 = vld [vmem:[#allocation6 + $0x60] sm:$0xff]
    %v172 = vld [vmem:[#allocation6 + $0x68] sm:$0xff]
    %v173 = vld [vmem:[#allocation6 + $0x70] sm:$0xff]
    %v174 = vld [vmem:[#allocation6 + $0x78] sm:$0xff]
    %v175 = vld [vmem:[%s4] sm:$0x1]
    %v177 = vlaneseq
    %v178 = vshrl.u32 %v177, 7
    %v179 = vsub.s32 0, %v178
    %v180 = vrot.slane %v175, %v179
    %182 = vmatprep.subr.mxu0 0.0
    %183 = vmatpush1.msra.mxu0 %v159
    %184 = vmatprep.subr.mxu0 0.0
    %185 = vmatpush1.msra.mxu0 %v160
    %186 = vmatprep.subr.mxu0 0.0
    %187 = vmatpush1.msra.mxu0 %v161
    %188 = vmatprep.subr.mxu0 0.0
    %189 = vmatpush1.msra.mxu0 %v162
    %190 = vmatprep.subr.mxu0 0.0
    %191 = vmatpush1.msra.mxu0 %v163
    %192 = vmatprep.subr.mxu0 0.0
    %193 = vmatpush1.msra.mxu0 %v164
    %194 = vmatprep.subr.mxu0 0.0
    %195 = vmatpush1.msra.mxu0 %v165
    %196 = vmatprep.subr.mxu0 0.0
    %197 = vmatpush1.msra.mxu0 %v166
    %198 = vmatprep.subr.mxu0 0.0
    %199 = vmatpush1.msra.mxu0 %v167
    %200 = vmatprep.subr.mxu0 0.0
    %201 = vmatpush1.msra.mxu0 %v168
    %202 = vmatprep.subr.mxu0 0.0
    %203 = vmatpush1.msra.mxu0 %v169
    %204 = vmatprep.subr.mxu0 0.0
    %205 = vmatpush1.msra.mxu0 %v170
    %206 = vmatprep.subr.mxu0 0.0
    %207 = vmatpush1.msra.mxu0 %v171
    %208 = vmatprep.subr.mxu0 0.0
    %209 = vmatpush1.msra.mxu0 %v172
    %210 = vmatprep.subr.mxu0 0.0
    %211 = vmatpush1.msra.mxu0 %v173
    %212 = vmatprep.subr.mxu0 0.0
    %213 = vmatpush1.msra.mxu0 %v174
    %214 = vmatprep.subr.mxu0 0.0
    %215 = vmatpush1.msra.mxu0 0.0
    %216 = vmatprep.subr.mxu0 0.0
    %217 = vmatpush1.msra.mxu0 0.0
    %218 = vmatprep.subr.mxu0 0.0
    %219 = vmatpush1.msra.mxu0 0.0
    %220 = vmatprep.subr.mxu0 0.0
    %221 = vmatpush1.msra.mxu0 0.0
    %222 = vmatprep.subr.mxu0 0.0
    %223 = vmatpush1.msra.mxu0 0.0
    %224 = vmatprep.subr.mxu0 0.0
    %225 = vmatpush1.msra.mxu0 0.0
    %226 = vmatprep.subr.mxu0 0.0
    %227 = vmatpush1.msra.mxu0 0.0
    %228 = vmatprep.subr.mxu0 0.0
    %229 = vmatpush1.msra.mxu0 0.0
    %230 = vmatprep.subr.mxu0 0.0
    %231 = vmatpush1.msra.mxu0 0.0
    %232 = vmatprep.subr.mxu0 0.0
    %233 = vmatpush1.msra.mxu0 0.0
    %234 = vmatprep.subr.mxu0 0.0
    %235 = vmatpush1.msra.mxu0 0.0
    %236 = vmatprep.subr.mxu0 0.0
    %237 = vmatpush1.msra.mxu0 0.0
    %238 = vmatprep.subr.mxu0 0.0
    %239 = vmatpush1.msra.mxu0 0.0
    %240 = vmatprep.subr.mxu0 0.0
    %241 = vmatpush1.msra.mxu0 0.0
    %242 = vmatprep.subr.mxu0 0.0
    %243 = vmatpush1.msra.mxu0 0.0
    %244 = vmatprep.subr.mxu0 0.0
    %245 = vmatpush1.msra.mxu0 0.0
    %246 = vmatprep.mubr.f32.mxu0 0.0
    %247 = vmatmul.mubr.f32.gmra.mrb[0].mxu0 %v157
    %v248 = vpop.f32.mrb[0].mxu0
    %v249 = vadd.f32 %v180, %v248
    %v250 = vpop.f32.mrb[0].mxu0
    %251 = vmatprep.mubr.f32.mxu0 0.0
    %252 = vmatmul.mubr.f32.gmra.mrb[0].mxu0 %v158
    %v253 = vpop.f32.mrb[0].mxu0
    %v254 = vadd.f32 %v180, %v253
    %v255 = vpop.f32.mrb[0].mxu0
    %256 = vdwg.mxu0
    %257 = vst [vmem:[#allocation8] sm:$0xff] %v249
    %258 = vst [vmem:[#allocation8 + $0x8] sm:$0xff] %v254
    // Predicated region
    $region30: #{_mlp_forward_impl.1} parent=1 // pred_check
      _
    $region31: #{_mlp_forward_impl.1} parent=1 // pred_check_branch
      %260 = sbr.rel (0) target = $region33
    $region32: #{_mlp_forward_impl.1} parent=1 // pred_region
      %s262 = ssub.s32 256, 256
      %263 = vsyncadd [#allocation5], %s262
      %s264 = sshll.u32 [#allocation8], 4
      %s265 = int_to_ptr.vmem [resolvable:$true] %s264
      %270 = dma.vmem_to_hbm [thread:$0]  %s265, 256, %s5, [#allocation5], 128, 128, 8
    $region33: #{_mlp_forward_impl.1} parent=1 // pred_fallthru
      _
    // Predicated region
    $region34: #{_mlp_forward_impl.1} parent=1 // pred_check
      _
    $region35: #{_mlp_forward_impl.1} parent=1 // pred_check_branch
      %272 = sbr.rel (0) target = $region37
    $region36: #{_mlp_forward_impl.1} parent=1 // pred_region
      %273 = dma.done [#allocation5], 256
    $region37: #{_mlp_forward_impl.1} parent=1 // pred_fallthru
      _
    %274 = vsyncpa [#allocation4], 1
    %275 = vsyncpa [#allocation7], 1
    %276 = vsyncpa [#allocation5], 1

</llo_original>
